<compile_context>
chip_gen: v5e
topology: v5e:2x2
jax: 0.10.0
libtpu: 0.0.40
codegen_flags: <defaults>
</compile_context>

<pallas_src>
import functools

import jax
import jax.numpy as jnp
from jax.experimental import pallas as pl
from jax.experimental.pallas import tpu as pltpu


def _attention_kernel(x_ref, gamma_ref, beta_ref, wqkv_ref, wout_ref,
                      out_ref, attn_ref, xn_ref, acc_ref, *, heads, eps):
    h = pl.program_id(1)

    # ---- LayerNorm (f32), computed once per batch row and cached in VMEM ----
    @pl.when(h == 0)
    def _():
        x = x_ref[0]                                          # (N, D) f32
        mean = jnp.mean(x, axis=-1, keepdims=True)
        var = jnp.mean(jnp.square(x - mean), axis=-1, keepdims=True)
        xn = (x - mean) * jax.lax.rsqrt(var + eps)
        xn = xn * gamma_ref[0] + beta_ref[0]                  # (N, D)
        xn_ref[...] = xn.astype(jnp.bfloat16)
        acc_ref[...] = jnp.zeros_like(acc_ref)

    xn_b = xn_ref[...]                                        # (N, D) bf16

    # ---- Per-head weight slabs, stored as (dh, D): no in-kernel transpose ---
    w = wqkv_ref[...]                                         # (3, 1, dh, D) bf16
    wq, wk, wv = w[0, 0], w[1, 0], w[2, 0]                    # each (dh, D)
    w_o = wout_ref[0]                                         # (dh, D) bf16

    contract_d = (((1,), (1,)), ((), ()))                     # contract D with D

    # ---- Q/K/V projection for this head (bf16 MXU, f32 accumulate) ----------
    # Softmax scale is pre-folded into wq in the wrapper.
    q = jax.lax.dot_general(xn_b, wq, contract_d,
                            preferred_element_type=jnp.float32)   # (N, dh)
    k = jax.lax.dot_general(xn_b, wk, contract_d,
                            preferred_element_type=jnp.float32)   # (N, dh)
    v = jax.lax.dot_general(xn_b, wv, contract_d,
                            preferred_element_type=jnp.float32)   # (N, dh)

    # ---- Scaled dot-product attention (softmax in f32) ----------------------
    sim = jax.lax.dot_general(q.astype(jnp.bfloat16), k.astype(jnp.bfloat16),
                              contract_d,
                              preferred_element_type=jnp.float32)  # (N, N)
    sim = sim - jnp.max(sim, axis=-1, keepdims=True)
    e = jnp.exp(sim)
    inv = pl.reciprocal(jnp.sum(e, axis=-1, keepdims=True), approx=True)
    attn = e * inv                                            # (N, N) f32
    attn_ref[0, 0] = attn

    # TODO(synk): dropout is identity here (dropout=0.0 / eval mode).
    out_h = jnp.dot(attn.astype(jnp.bfloat16), v.astype(jnp.bfloat16),
                    preferred_element_type=jnp.float32)       # (N, dh)

    # ---- Per-head slice of the output projection, accumulated over heads ----
    acc_ref[...] += jnp.dot(out_h.astype(jnp.bfloat16), w_o,
                            preferred_element_type=jnp.float32)   # (N, D)

    @pl.when(h == heads - 1)
    def _():
        out_ref[0] = acc_ref[...].astype(out_ref.dtype)


def attention_forward(x, gamma, beta, w_qkv, w_out, *, heads, dim_head,
                      eps=1e-5):
    B, N, D = x.shape
    scale = dim_head ** (-0.5)

    # Repack weights once on the host side:
    #   W_qkv (3*H*dh, D) -> (3, H, dh, D): each grid step DMAs one head slab.
    #   W_out (D, H*dh)   -> (H, dh, D):    per-head columns, pre-transposed.
    # Fold the softmax scale into W_q and cast to bf16 (MXU operand dtype);
    # accumulation stays f32 in-kernel.
    w_qkv_h = w_qkv.reshape(3, heads, dim_head, D)
    w_qkv_h = w_qkv_h.at[0].multiply(scale)
    w_qkv_h = w_qkv_h.astype(jnp.bfloat16)
    w_out_h = (w_out.reshape(D, heads, dim_head)
                    .transpose(1, 2, 0)
                    .astype(jnp.bfloat16))                    # (H, dh, D)

    kernel = functools.partial(_attention_kernel, heads=heads, eps=eps)

    out_shapes = (
        jax.ShapeDtypeStruct((B, N, D), jnp.float32),
        jax.ShapeDtypeStruct((B, heads, N, N), jnp.float32),
    )

    return pl.pallas_call(
        kernel,
        out_shape=out_shapes,
        grid_spec=pltpu.PrefetchScalarGridSpec(
            num_scalar_prefetch=0,
            grid=(B, heads),
            in_specs=[
                pl.BlockSpec((1, N, D), lambda b, h: (b, 0, 0)),              # x
                pl.BlockSpec((1, D), lambda b, h: (0, 0)),                     # gamma
                pl.BlockSpec((1, D), lambda b, h: (0, 0)),                     # beta
                pl.BlockSpec((3, 1, dim_head, D), lambda b, h: (0, h, 0, 0)),  # W_qkv slabs
                pl.BlockSpec((1, dim_head, D), lambda b, h: (h, 0, 0)),        # W_out slabs
            ],
            out_specs=(
                pl.BlockSpec((1, N, D), lambda b, h: (b, 0, 0)),               # out (resident over h)
                pl.BlockSpec((1, 1, N, N), lambda b, h: (b, h, 0, 0)),         # attn
            ),
            scratch_shapes=[
                pltpu.VMEM((N, D), jnp.bfloat16),   # cached LayerNorm(x) per batch row
                pltpu.VMEM((N, D), jnp.float32),    # output-projection accumulator
            ],
        ),
        compiler_params=pltpu.CompilerParams(
            dimension_semantics=("parallel", "arbitrary")),
    )(x, gamma, beta, w_qkv_h, w_out_h)


def _reference(x, gamma, beta, w_qkv, w_out, *, heads, dim_head, eps=1e-5):
    """Pure-JAX f32 reference matching the PyTorch forward."""
    B, N, D = x.shape
    inner = heads * dim_head
    scale = dim_head ** (-0.5)

    mean = jnp.mean(x, axis=-1, keepdims=True)
    var = jnp.mean(jnp.square(x - mean), axis=-1, keepdims=True)
    xn = (x - mean) / jnp.sqrt(var + eps) * gamma + beta

    qkv = xn @ w_qkv.T
    q, k, v = jnp.split(qkv, 3, axis=-1)

    def to_heads(t):
        return t.reshape(B, N, heads, dim_head).transpose(0, 2, 1, 3)

    q, k, v = map(to_heads, (q, k, v))
    q = q * scale
    sim = jnp.einsum('bhid,bhjd->bhij', q, k)
    attn = jax.nn.softmax(sim, axis=-1)
    out = jnp.einsum('bhij,bhjd->bhid', attn, v)
    out = out.transpose(0, 2, 1, 3).reshape(B, N, inner)
    out = out @ w_out.T
    return out, attn


if __name__ == "__main__":
    # Small, module-consistent shapes.
    B, N, D = 2, 8, 32
    heads, dim_head = 4, 16
    inner = heads * dim_head

    key = jax.random.PRNGKey(0)
    kx, kq, ko, kg, kb = jax.random.split(key, 5)

    x = jax.random.normal(kx, (B, N, D), dtype=jnp.float32)

    # Deterministic parameter init (shapes follow nn.LayerNorm / nn.Linear).
    gamma = 1.0 + 0.1 * jax.random.normal(kg, (1, D), dtype=jnp.float32)
    beta = 0.1 * jax.random.normal(kb, (1, D), dtype=jnp.float32)
    w_qkv = jax.random.normal(kq, (3 * inner, D), dtype=jnp.float32) * 0.05
    w_out = jax.random.normal(ko, (D, inner), dtype=jnp.float32) * 0.05

    out, attn = attention_forward(x, gamma, beta, w_qkv, w_out,
                                  heads=heads, dim_head=dim_head)
    out = jax.block_until_ready(out)
    attn = jax.block_until_ready(attn)

    out_ref, attn_ref = _reference(x, gamma[0], beta[0], w_qkv, w_out,
                                   heads=heads, dim_head=dim_head)

    assert out.shape == (B, N, D)
    assert attn.shape == (B, heads, N, N)
    # bf16 MXU operands + approx reciprocal -> looser tolerances than pure f32.
    assert jnp.allclose(attn, attn_ref, atol=1e-2, rtol=1e-2)
    assert jnp.allclose(out, out_ref, atol=2e-2, rtol=2e-2)

    print("KERNEL_OK")
</pallas_src>

<mosaic_0001>
module attributes {stable_mosaic.version = 11 : i64} {
  func.func @_attention_kernel(%arg0: i32, %arg1: i32, %arg2: memref<1x8x32xf32, #tpu.memory_space<vmem>>, %arg3: memref<1x32xf32, #tpu.memory_space<vmem>>, %arg4: memref<1x32xf32, #tpu.memory_space<vmem>>, %arg5: memref<3x1x16x32xbf16, #tpu.memory_space<vmem>>, %arg6: memref<1x16x32xbf16, #tpu.memory_space<vmem>>, %arg7: memref<1x8x32xf32, #tpu.memory_space<vmem>>, %arg8: memref<1x1x8x8xf32, #tpu.memory_space<vmem>>, %arg9: memref<8x32xbf16, #tpu.memory_space<vmem>>, %arg10: memref<8x32xf32, #tpu.memory_space<vmem>>) attributes {dimension_semantics = [#tpu.dimension_semantics<parallel>, #tpu.dimension_semantics<arbitrary>], iteration_bounds = array<i64: 2, 4>, scalar_prefetch = 0 : i64, scratch_operands = 2 : i64, tpu.core_type = #tpu.core_type<tc>, window_params = [{transform_indices = @transform_0, window_bounds = array<i64: 1, 8, 32>}, {pipeline_mode = #tpu.pipeline_mode<synchronous>, transform_indices = @transform_1, window_bounds = array<i64: 1, 32>}, {pipeline_mode = #tpu.pipeline_mode<synchronous>, transform_indices = @transform_2, window_bounds = array<i64: 1, 32>}, {transform_indices = @transform_3, window_bounds = array<i64: 3, 1, 16, 32>}, {transform_indices = @transform_4, window_bounds = array<i64: 1, 16, 32>}, {transform_indices = @transform_5, window_bounds = array<i64: 1, 8, 32>}, {transform_indices = @transform_6, window_bounds = array<i64: 1, 1, 8, 8>}]} {
    %c0_i32 = arith.constant 0 : i32
    %0 = arith.cmpi eq, %arg1, %c0_i32 : i32
    %1 = arith.extui %0 : i1 to i32
    %c0_i32_0 = arith.constant 0 : i32
    %2 = arith.cmpi ne, %1, %c0_i32_0 : i32
    scf.if %2 {
      %c0_25 = arith.constant 0 : index
      %c0_26 = arith.constant 0 : index
      %c0_27 = arith.constant 0 : index
      %43 = vector.load %arg2[%c0_25, %c0_26, %c0_27] : memref<1x8x32xf32, #tpu.memory_space<vmem>>, vector<1x8x32xf32>
      %44 = vector.shape_cast %43 : vector<1x8x32xf32> to vector<8x32xf32>
      %cst_28 = arith.constant dense<0.000000e+00> : vector<8xf32>
      %45 = vector.multi_reduction <add>, %44, %cst_28 [1] : vector<8x32xf32> to vector<8xf32>
      %46 = vector.shape_cast %45 : vector<8xf32> to vector<8x1xf32>
      %cst_29 = arith.constant 3.200000e+01 : f32
      %47 = vector.broadcast %cst_29 : f32 to vector<8x1xf32>
      %48 = arith.divf %46, %47 : vector<8x1xf32>
      %49 = vector.broadcast %48 : vector<8x1xf32> to vector<8x32xf32>
      %50 = arith.subf %44, %49 : vector<8x32xf32>
      %51 = arith.mulf %50, %50 : vector<8x32xf32>
      %cst_30 = arith.constant dense<0.000000e+00> : vector<8xf32>
      %52 = vector.multi_reduction <add>, %51, %cst_30 [1] : vector<8x32xf32> to vector<8xf32>
      %53 = vector.shape_cast %52 : vector<8xf32> to vector<8x1xf32>
      %cst_31 = arith.constant 3.200000e+01 : f32
      %54 = vector.broadcast %cst_31 : f32 to vector<8x1xf32>
      %55 = arith.divf %53, %54 : vector<8x1xf32>
      %56 = vector.broadcast %48 : vector<8x1xf32> to vector<8x32xf32>
      %57 = arith.subf %44, %56 : vector<8x32xf32>
      %cst_32 = arith.constant 9.99999974E-6 : f32
      %58 = vector.broadcast %cst_32 : f32 to vector<8x1xf32>
      %59 = arith.addf %55, %58 : vector<8x1xf32>
      %60 = math.rsqrt %59 : vector<8x1xf32>
      %61 = vector.broadcast %60 : vector<8x1xf32> to vector<8x32xf32>
      %62 = arith.mulf %57, %61 : vector<8x32xf32>
      %c0_33 = arith.constant 0 : index
      %c0_34 = arith.constant 0 : index
      %63 = vector.load %arg3[%c0_33, %c0_34] : memref<1x32xf32, #tpu.memory_space<vmem>>, vector<1x32xf32>
      %64 = vector.shape_cast %63 : vector<1x32xf32> to vector<32xf32>
      %65 = vector.shape_cast %64 : vector<32xf32> to vector<1x32xf32>
      %66 = vector.broadcast %65 : vector<1x32xf32> to vector<8x32xf32>
      %67 = arith.mulf %62, %66 : vector<8x32xf32>
      %c0_35 = arith.constant 0 : index
      %c0_36 = arith.constant 0 : index
      %68 = vector.load %arg4[%c0_35, %c0_36] : memref<1x32xf32, #tpu.memory_space<vmem>>, vector<1x32xf32>
      %69 = vector.shape_cast %68 : vector<1x32xf32> to vector<32xf32>
      %70 = vector.shape_cast %69 : vector<32xf32> to vector<1x32xf32>
      %71 = vector.broadcast %70 : vector<1x32xf32> to vector<8x32xf32>
      %72 = arith.addf %67, %71 : vector<8x32xf32>
      %73 = arith.truncf %72 : vector<8x32xf32> to vector<8x32xbf16>
      %c0_37 = arith.constant 0 : index
      %c0_38 = arith.constant 0 : index
      %74 = vector.load %arg9[%c0_37, %c0_38] : memref<8x32xbf16, #tpu.memory_space<vmem>>, vector<8x32xbf16>
      tpu.vector_store %arg9[%c0_37, %c0_38], %73 {strides = array<i32>} : memref<8x32xbf16, #tpu.memory_space<vmem>>, vector<8x32xbf16>,
      %cst_39 = arith.constant 0.000000e+00 : f32
      %75 = vector.broadcast %cst_39 : f32 to vector<8x32xf32>
      %c0_40 = arith.constant 0 : index
      %c0_41 = arith.constant 0 : index
      %76 = vector.load %arg10[%c0_40, %c0_41] : memref<8x32xf32, #tpu.memory_space<vmem>>, vector<8x32xf32>
      tpu.vector_store %arg10[%c0_40, %c0_41], %75 {strides = array<i32>} : memref<8x32xf32, #tpu.memory_space<vmem>>, vector<8x32xf32>,
    } else {
    }
    %c0 = arith.constant 0 : index
    %c0_1 = arith.constant 0 : index
    %3 = vector.load %arg9[%c0, %c0_1] : memref<8x32xbf16, #tpu.memory_space<vmem>>, vector<8x32xbf16>
    %c0_2 = arith.constant 0 : index
    %c0_3 = arith.constant 0 : index
    %c0_4 = arith.constant 0 : index
    %c0_5 = arith.constant 0 : index
    %4 = vector.load %arg5[%c0_2, %c0_3, %c0_4, %c0_5] : memref<3x1x16x32xbf16, #tpu.memory_space<vmem>>, vector<3x1x16x32xbf16>
    %5 = vector.extract_strided_slice %4 {offsets = [0, 0, 0, 0], sizes = [1, 1, 16, 32], strides = [1, 1, 1, 1]} : vector<3x1x16x32xbf16> to vector<1x1x16x32xbf16>
    %6 = vector.shape_cast %5 : vector<1x1x16x32xbf16> to vector<16x32xbf16>
    %7 = vector.extract_strided_slice %4 {offsets = [1, 0, 0, 0], sizes = [1, 1, 16, 32], strides = [1, 1, 1, 1]} : vector<3x1x16x32xbf16> to vector<1x1x16x32xbf16>
    %8 = vector.shape_cast %7 : vector<1x1x16x32xbf16> to vector<16x32xbf16>
    %9 = vector.extract_strided_slice %4 {offsets = [2, 0, 0, 0], sizes = [1, 1, 16, 32], strides = [1, 1, 1, 1]} : vector<3x1x16x32xbf16> to vector<1x1x16x32xbf16>
    %10 = vector.shape_cast %9 : vector<1x1x16x32xbf16> to vector<16x32xbf16>
    %c0_6 = arith.constant 0 : index
    %c0_7 = arith.constant 0 : index
    %c0_8 = arith.constant 0 : index
    %11 = vector.load %arg6[%c0_6, %c0_7, %c0_8] : memref<1x16x32xbf16, #tpu.memory_space<vmem>>, vector<1x16x32xbf16>
    %12 = vector.shape_cast %11 : vector<1x16x32xbf16> to vector<16x32xbf16>
    %cst = arith.constant dense<0.000000e+00> : vector<8x16xf32>
    %13 = tpu.matmul %3, %6, %cst {dimension_numbers = #tpu.dot_dimension_numbers<[1], [1], [0], [0], [0, 0, 1, 0], [], []>} : vector<8x32xbf16>, vector<16x32xbf16>, vector<8x16xf32> -> vector<8x16xf32>
    %cst_9 = arith.constant dense<0.000000e+00> : vector<8x16xf32>
    %14 = tpu.matmul %3, %8, %cst_9 {dimension_numbers = #tpu.dot_dimension_numbers<[1], [1], [0], [0], [0, 0, 1, 0], [], []>} : vector<8x32xbf16>, vector<16x32xbf16>, vector<8x16xf32> -> vector<8x16xf32>
    %cst_10 = arith.constant dense<0.000000e+00> : vector<8x16xf32>
    %15 = tpu.matmul %3, %10, %cst_10 {dimension_numbers = #tpu.dot_dimension_numbers<[1], [1], [0], [0], [0, 0, 1, 0], [], []>} : vector<8x32xbf16>, vector<16x32xbf16>, vector<8x16xf32> -> vector<8x16xf32>
    %16 = arith.truncf %13 : vector<8x16xf32> to vector<8x16xbf16>
    %17 = arith.truncf %14 : vector<8x16xf32> to vector<8x16xbf16>
    %cst_11 = arith.constant dense<0.000000e+00> : vector<8x8xf32>
    %18 = tpu.matmul %16, %17, %cst_11 {dimension_numbers = #tpu.dot_dimension_numbers<[1], [1], [0], [0], [0, 0, 1, 0], [], []>} : vector<8x16xbf16>, vector<8x16xbf16>, vector<8x8xf32> -> vector<8x8xf32>
    %cst_12 = arith.constant dense<0xFF800000> : vector<8xf32>
    %19 = vector.multi_reduction <maximumf>, %18, %cst_12 [1] : vector<8x8xf32> to vector<8xf32>
    %20 = vector.shape_cast %19 : vector<8xf32> to vector<8x1xf32>
    %21 = vector.broadcast %20 : vector<8x1xf32> to vector<8x8xf32>
    %22 = arith.subf %18, %21 : vector<8x8xf32>
    %23 = math.exp %22 : vector<8x8xf32>
    %cst_13 = arith.constant dense<0.000000e+00> : vector<8xf32>
    %24 = vector.multi_reduction <add>, %23, %cst_13 [1] : vector<8x8xf32> to vector<8xf32>
    %25 = vector.shape_cast %24 : vector<8xf32> to vector<8x1xf32>
    %26 = tpu.reciprocal %25 {approx = true} : vector<8x1xf32> -> vector<8x1xf32>
    %27 = vector.broadcast %26 : vector<8x1xf32> to vector<8x8xf32>
    %28 = arith.mulf %23, %27 : vector<8x8xf32>
    %c0_14 = arith.constant 0 : index
    %c0_15 = arith.constant 0 : index
    %c0_16 = arith.constant 0 : index
    %c0_17 = arith.constant 0 : index
    %29 = vector.load %arg8[%c0_14, %c0_15, %c0_16, %c0_17] : memref<1x1x8x8xf32, #tpu.memory_space<vmem>>, vector<1x1x8x8xf32>
    %30 = vector.shape_cast %29 : vector<1x1x8x8xf32> to vector<8x8xf32>
    %31 = vector.shape_cast %28 : vector<8x8xf32> to vector<1x1x8x8xf32>
    tpu.vector_store %arg8[%c0_14, %c0_15, %c0_16, %c0_17], %31 {strides = array<i32>} : memref<1x1x8x8xf32, #tpu.memory_space<vmem>>, vector<1x1x8x8xf32>,
    %32 = arith.truncf %28 : vector<8x8xf32> to vector<8x8xbf16>
    %33 = arith.truncf %15 : vector<8x16xf32> to vector<8x16xbf16>
    %cst_18 = arith.constant dense<0.000000e+00> : vector<8x16xf32>
    %34 = tpu.matmul %32, %33, %cst_18 {dimension_numbers = #tpu.dot_dimension_numbers<[1], [0], [0], [1], [0, 0, 1, 1], [], []>} : vector<8x8xbf16>, vector<8x16xbf16>, vector<8x16xf32> -> vector<8x16xf32>
    %c0_19 = arith.constant 0 : index
    %c0_20 = arith.constant 0 : index
    %35 = vector.load %arg10[%c0_19, %c0_20] : memref<8x32xf32, #tpu.memory_space<vmem>>, vector<8x32xf32>
    %36 = arith.truncf %34 : vector<8x16xf32> to vector<8x16xbf16>
    %cst_21 = arith.constant dense<0.000000e+00> : vector<8x32xf32>
    %37 = tpu.matmul %36, %12, %cst_21 {dimension_numbers = #tpu.dot_dimension_numbers<[1], [0], [0], [1], [0, 0, 1, 1], [], []>} : vector<8x16xbf16>, vector<16x32xbf16>, vector<8x32xf32> -> vector<8x32xf32>
    %38 = arith.addf %35, %37 : vector<8x32xf32>
    %c0_22 = arith.constant 0 : index
    %c0_23 = arith.constant 0 : index
    %39 = vector.load %arg10[%c0_22, %c0_23] : memref<8x32xf32, #tpu.memory_space<vmem>>, vector<8x32xf32>
    tpu.vector_store %arg10[%c0_22, %c0_23], %38 {strides = array<i32>} : memref<8x32xf32, #tpu.memory_space<vmem>>, vector<8x32xf32>,
    %c3_i32 = arith.constant 3 : i32
    %40 = arith.cmpi eq, %arg1, %c3_i32 : i32
    %41 = arith.extui %40 : i1 to i32
    %c0_i32_24 = arith.constant 0 : i32
    %42 = arith.cmpi ne, %41, %c0_i32_24 : i32
    scf.if %42 {
      %c0_25 = arith.constant 0 : index
      %c0_26 = arith.constant 0 : index
      %43 = vector.load %arg10[%c0_25, %c0_26] : memref<8x32xf32, #tpu.memory_space<vmem>>, vector<8x32xf32>
      %c0_27 = arith.constant 0 : index
      %c0_28 = arith.constant 0 : index
      %c0_29 = arith.constant 0 : index
      %44 = vector.load %arg7[%c0_27, %c0_28, %c0_29] : memref<1x8x32xf32, #tpu.memory_space<vmem>>, vector<1x8x32xf32>
      %45 = vector.shape_cast %44 : vector<1x8x32xf32> to vector<8x32xf32>
      %46 = vector.shape_cast %43 : vector<8x32xf32> to vector<1x8x32xf32>
      tpu.vector_store %arg7[%c0_27, %c0_28, %c0_29], %46 {strides = array<i32>} : memref<1x8x32xf32, #tpu.memory_space<vmem>>, vector<1x8x32xf32>,
    } else {
    }
    return
  }
  func.func @transform_0(%arg0: i32, %arg1: i32) -> (i32, i32, i32) {
    %c0_i32 = arith.constant 0 : i32
    %c0_i32_0 = arith.constant 0 : i32
    %c0_i32_1 = arith.constant 0 : i32
    return %arg0, %c0_i32, %c0_i32_0 : i32, i32, i32
  }
  func.func @transform_1(%arg0: i32, %arg1: i32) -> (i32, i32) {
    %c0_i32 = arith.constant 0 : i32
    %c0_i32_0 = arith.constant 0 : i32
    %c0_i32_1 = arith.constant 0 : i32
    return %c0_i32, %c0_i32_0 : i32, i32
  }
  func.func @transform_2(%arg0: i32, %arg1: i32) -> (i32, i32) {
    %c0_i32 = arith.constant 0 : i32
    %c0_i32_0 = arith.constant 0 : i32
    %c0_i32_1 = arith.constant 0 : i32
    return %c0_i32, %c0_i32_0 : i32, i32
  }
  func.func @transform_3(%arg0: i32, %arg1: i32) -> (i32, i32, i32, i32) {
    %c0_i32 = arith.constant 0 : i32
    %c0_i32_0 = arith.constant 0 : i32
    %c0_i32_1 = arith.constant 0 : i32
    %c0_i32_2 = arith.constant 0 : i32
    return %c0_i32, %arg1, %c0_i32_0, %c0_i32_1 : i32, i32, i32, i32
  }
  func.func @transform_4(%arg0: i32, %arg1: i32) -> (i32, i32, i32) {
    %c0_i32 = arith.constant 0 : i32
    %c0_i32_0 = arith.constant 0 : i32
    %c0_i32_1 = arith.constant 0 : i32
    return %arg1, %c0_i32, %c0_i32_0 : i32, i32, i32
  }
  func.func @transform_5(%arg0: i32, %arg1: i32) -> (i32, i32, i32) {
    %c0_i32 = arith.constant 0 : i32
    %c0_i32_0 = arith.constant 0 : i32
    %c0_i32_1 = arith.constant 0 : i32
    return %arg0, %c0_i32, %c0_i32_0 : i32, i32, i32
  }
  func.func @transform_6(%arg0: i32, %arg1: i32) -> (i32, i32, i32, i32) {
    %c0_i32 = arith.constant 0 : i32
    %c0_i32_0 = arith.constant 0 : i32
    %c0_i32_1 = arith.constant 0 : i32
    return %arg0, %arg1, %c0_i32, %c0_i32_0 : i32, i32, i32, i32
  }
}

</mosaic_0001>

<llo_original>
// kernel: tpu_custom_call.1
$region0: #{tpu_custom_call.1}
  #allocation0 [shape = 'u32[]', space=smem, size = 0x4, offset = 0x4, fixed_abs, tag = 'smem constant byte address 0x4 - core index']
  #allocation1 [shape = 'u32[72,128]{1,0:T(1,128)}', space=vmem, size = 0x9000, scoped, tag = 'internal scratch']
  #allocation2 [shape = 'bf16[8,32]{1,0:T(8,128)(2,1)}', space=vmem, size = 0x800, scoped, tag = 'scratch operand']
  #allocation3 [shape = 'f32[8,32]{1,0:T(8,128)}', space=vmem, size = 0x1000, scoped, tag = 'scratch operand']
  #allocation14 [shape = 's32[]', space=sflag, size = 0x4, offset = 0, fixed_abs, tag = 'sflag constant byte address 0x0 - dummy sync flag']
  %s0 = inlined_call_operand.hbm [shape: f32[2,8,32], index: 0, kind: input, shape index: {}]
  %s1 = inlined_call_operand.hbm [shape: f32[1,32], index: 1, kind: input, shape index: {}]
  %s2 = inlined_call_operand.vmem [shape: f32[1,32], index: 2, kind: input, shape index: {}]
  %s3 = inlined_call_operand.hbm [shape: bf16[3,4,16,32], index: 3, kind: input, shape index: {}]
  %s4 = inlined_call_operand.hbm [shape: bf16[4,16,32], index: 4, kind: input, shape index: {}]
  %s5 = inlined_call_operand.hbm [shape: f32[2,8,32], index: 5, kind: output, shape index: {0}]
  %s6 = inlined_call_operand.hbm [shape: f32[2,4,8,8], index: 6, kind: output, shape index: {1}]
  %7 = xla_tuple %s5, %s6
  %s8 = sld [smem:[#allocation0]]
  $region85: #{tpu_custom_call.1} parent=0
    _
  %s10 = ssub.s32 1, %s8
  %s11 = scalar_select 0, %s10, %s8
  $region1: #{tpu_custom_call.1} parent=0
    #allocation4 [shape = 'u8[8192]{0}', space=vmem, size = 0x2000, scoped, tag = 'input window, operand 0']
    #allocation5 [shape = 's32[2]{0}', space=sflag, size = 0x8, scoped, tag = 'scoped memory for tpu_custom_call.1']
    #allocation6 [shape = 's32[2]{0}', space=sflag, size = 0x8, scoped, tag = 'scoped memory for tpu_custom_call.1']
    #allocation7 [shape = 'u8[512]{0}', space=vmem, size = 0x400, scoped, tag = 'input window, operand 1, single buffered']
    #allocation8 [shape = 's32[1]{0}', space=sflag, size = 0x4, scoped, tag = 'scoped memory for tpu_custom_call.1']
    #allocation9 [shape = 'u8[24576]{0}', space=vmem, size = 0x6000, scoped, tag = 'input window, operand 3']
    #allocation10 [shape = 'u8[8192]{0}', space=vmem, size = 0x2000, scoped, tag = 'input window, operand 4']
    #allocation11 [shape = 'u8[8192]{0}', space=vmem, size = 0x2000, scoped, tag = 'output window, operand 0']
    #allocation12 [shape = 'u8[8192]{0}', space=vmem, size = 0x2000, scoped, tag = 'output window, operand 1']
    #allocation13 [shape = 's32[2]{0}', space=sflag, size = 0x8, scoped, tag = 'scoped memory for tpu_custom_call.1']
    %12 = vsyncpa [#allocation5], 0
    %s13 = scalar_lea.sflag [#allocation5], 1
    %14 = vsyncpa %s13, 0
    %15 = vsyncpa [#allocation8], 0
    %16 = vsyncpa [#allocation6], 0
    %s17 = scalar_lea.sflag [#allocation6], 1
    %18 = vsyncpa %s17, 0
    %19 = vsyncpa [#allocation13], 0
    %s20 = scalar_lea.sflag [#allocation13], 1
    %21 = vsyncpa %s20, 0
    loop: start=0, step=1, limit=10
    $region2: #{tpu_custom_call.1} parent=1 // loop_pre_header
      _
    $region3: #{tpu_custom_call.1} parent=1 // loop_header
      %s23 = sphi 0, %s27
      %p24 = scmp.ge.s32.totalorder %s23, 10
      %s30 = sphi 0, %s42
      %s31 = sphi 0, %s38
      %s32 = sphi 0, %s30
      %s33 = sphi 0, %s31
      %s34 = sphi 0, %s32
      %s35 = sphi 0, %s33
      %s45 = sphi 0, %s47
      %s48 = sphi 0, %s45
      %s49 = sphi 0, %s48
      %s65 = sphi 0, %s49
      %s69 = sphi 0, %s69
      %s71 = sphi 0, %s69
      %s72 = sphi 0, %s71
      %s86 = sphi 0, %s72
      %s90 = sphi 0, %s90
      %s92 = sphi 0, %s90
      %s93 = sphi 0, %s92
      %s107 = sphi 0, %s93
      %s113 = sphi 0, %s115
      %s116 = sphi 0, %s113
      %s117 = sphi 0, %s116
      %s133 = sphi 0, %s117
      %s139 = sphi 0, %s141
      %s142 = sphi 0, %s139
      %s143 = sphi 0, %s142
      %s159 = sphi 0, %s143
      %s165 = sphi 0, %s167
      %s168 = sphi 0, %s165
      %s169 = sphi 0, %s168
      %s185 = sphi 0, %s169
      %s193 = sphi 0, %s195
      %s196 = sphi 0, %s193
      %s197 = sphi 0, %s196
      %s213 = sphi 0, %s197
    $region4: #{tpu_custom_call.1} parent=1 // loop_header_branch
      %26 = sbr.rel (%p24) target = $region8
    $region5: #{tpu_custom_call.1} parent=1 // loop_body
      %s28 = ssub.s32 %s23, 1
      %s29 = ssub.s32 %s23, 2
      %s36 = sadd.s32 1, %s31
      %p37 = scmp.ge.s32.totalorder %s36, 4
      %s38 = scalar_select %p37, 0, %s36
      %s39 = sadd.s32 1, %s30
      %s40 = scalar_select %p37, %s39, %s30
      %p41 = scmp.ge.s32.totalorder %s40, 2
      %s42 = scalar_select %p41, 0, %s40
      %s43 = ssub.s32 %s30, %s42
      %p44 = scmp.eq.s32.totalorder %s43, 0
      %s46 = sadd.s32 %s45, 1
      %s47 = scalar_select %p44, %s45, %s46
      %p50 = pneg %p44
      %p51 = scmp.eq.s32.totalorder %s23, 7
      %p52 = por %p50, %p51
      %p53 = scmp.ne.s32.totalorder %s45, %s48
      %p54 = scmp.eq.s32.totalorder %s23, 0
      %p55 = por %p53, %p54
      %p56 = scmp.ne.s32.totalorder %s45, %s48
      %p57 = scmp.eq.s32.totalorder %s28, 7
      %p58 = por %p56, %p57
      %p59 = scmp.ne.s32.totalorder %s48, %s49
      %p60 = scmp.eq.s32.totalorder %s28, 0
      %p61 = por %p59, %p60
      %p62 = scmp.ne.s32.totalorder %s48, %s49
      %p63 = scmp.eq.s32.totalorder %s29, 7
      %p64 = por %p62, %p63
      %p66 = scmp.ne.s32.totalorder %s49, %s65
      %p67 = scmp.eq.s32.totalorder %s29, 0
      %p68 = por %p66, %p67
      %s70 = sadd.s32 %s69, 1
      %p73 = scmp.eq.s32.totalorder %s23, 7
      %p74 = scmp.ne.s32.totalorder %s69, %s71
      %p75 = scmp.eq.s32.totalorder %s23, 0
      %p76 = por %p74, %p75
      %p77 = scmp.ne.s32.totalorder %s69, %s71
      %p78 = scmp.eq.s32.totalorder %s28, 7
      %p79 = por %p77, %p78
      %p80 = scmp.ne.s32.totalorder %s71, %s72
      %p81 = scmp.eq.s32.totalorder %s28, 0
      %p82 = por %p80, %p81
      %p83 = scmp.ne.s32.totalorder %s71, %s72
      %p84 = scmp.eq.s32.totalorder %s29, 7
      %p85 = por %p83, %p84
      %p87 = scmp.ne.s32.totalorder %s72, %s86
      %p88 = scmp.eq.s32.totalorder %s29, 0
      %p89 = por %p87, %p88
      %s91 = sadd.s32 %s90, 1
      %p94 = scmp.eq.s32.totalorder %s23, 7
      %p95 = scmp.ne.s32.totalorder %s90, %s92
      %p96 = scmp.eq.s32.totalorder %s23, 0
      %p97 = por %p95, %p96
      %p98 = scmp.ne.s32.totalorder %s90, %s92
      %p99 = scmp.eq.s32.totalorder %s28, 7
      %p100 = por %p98, %p99
      %p101 = scmp.ne.s32.totalorder %s92, %s93
      %p102 = scmp.eq.s32.totalorder %s28, 0
      %p103 = por %p101, %p102
      %p104 = scmp.ne.s32.totalorder %s92, %s93
      %p105 = scmp.eq.s32.totalorder %s29, 7
      %p106 = por %p104, %p105
      %p108 = scmp.ne.s32.totalorder %s93, %s107
      %p109 = scmp.eq.s32.totalorder %s29, 0
      %p110 = por %p108, %p109
      %s111 = ssub.s32 %s31, %s38
      %p112 = scmp.eq.s32.totalorder %s111, 0
      %s114 = sadd.s32 %s113, 1
      %s115 = scalar_select %p112, %s113, %s114
      %p118 = pneg %p112
      %p119 = scmp.eq.s32.totalorder %s23, 7
      %p120 = por %p118, %p119
      %p121 = scmp.ne.s32.totalorder %s113, %s116
      %p122 = scmp.eq.s32.totalorder %s23, 0
      %p123 = por %p121, %p122
      %p124 = scmp.ne.s32.totalorder %s113, %s116
      %p125 = scmp.eq.s32.totalorder %s28, 7
      %p126 = por %p124, %p125
      %p127 = scmp.ne.s32.totalorder %s116, %s117
      %p128 = scmp.eq.s32.totalorder %s28, 0
      %p129 = por %p127, %p128
      %p130 = scmp.ne.s32.totalorder %s116, %s117
      %p131 = scmp.eq.s32.totalorder %s29, 7
      %p132 = por %p130, %p131
      %p134 = scmp.ne.s32.totalorder %s117, %s133
      %p135 = scmp.eq.s32.totalorder %s29, 0
      %p136 = por %p134, %p135
      %s137 = ssub.s32 %s31, %s38
      %p138 = scmp.eq.s32.totalorder %s137, 0
      %s140 = sadd.s32 %s139, 1
      %s141 = scalar_select %p138, %s139, %s140
      %p144 = pneg %p138
      %p145 = scmp.eq.s32.totalorder %s23, 7
      %p146 = por %p144, %p145
      %p147 = scmp.ne.s32.totalorder %s139, %s142
      %p148 = scmp.eq.s32.totalorder %s23, 0
      %p149 = por %p147, %p148
      %p150 = scmp.ne.s32.totalorder %s139, %s142
      %p151 = scmp.eq.s32.totalorder %s28, 7
      %p152 = por %p150, %p151
      %p153 = scmp.ne.s32.totalorder %s142, %s143
      %p154 = scmp.eq.s32.totalorder %s28, 0
      %p155 = por %p153, %p154
      %p156 = scmp.ne.s32.totalorder %s142, %s143
      %p157 = scmp.eq.s32.totalorder %s29, 7
      %p158 = por %p156, %p157
      %p160 = scmp.ne.s32.totalorder %s143, %s159
      %p161 = scmp.eq.s32.totalorder %s29, 0
      %p162 = por %p160, %p161
      %s163 = ssub.s32 %s30, %s42
      %p164 = scmp.eq.s32.totalorder %s163, 0
      %s166 = sadd.s32 %s165, 1
      %s167 = scalar_select %p164, %s165, %s166
      %p170 = pneg %p164
      %p171 = scmp.eq.s32.totalorder %s23, 7
      %p172 = por %p170, %p171
      %p173 = scmp.ne.s32.totalorder %s165, %s168
      %p174 = scmp.eq.s32.totalorder %s23, 0
      %p175 = por %p173, %p174
      %p176 = scmp.ne.s32.totalorder %s165, %s168
      %p177 = scmp.eq.s32.totalorder %s28, 7
      %p178 = por %p176, %p177
      %p179 = scmp.ne.s32.totalorder %s168, %s169
      %p180 = scmp.eq.s32.totalorder %s28, 0
      %p181 = por %p179, %p180
      %p182 = scmp.ne.s32.totalorder %s168, %s169
      %p183 = scmp.eq.s32.totalorder %s29, 7
      %p184 = por %p182, %p183
      %p186 = scmp.ne.s32.totalorder %s169, %s185
      %p187 = scmp.eq.s32.totalorder %s29, 0
      %p188 = por %p186, %p187
      %s189 = ssub.s32 %s30, %s42
      %s190 = ssub.s32 %s31, %s38
      %s191 = sor.u32 %s189, %s190
      %p192 = scmp.eq.s32.totalorder %s191, 0
      %s194 = sadd.s32 %s193, 1
      %s195 = scalar_select %p192, %s193, %s194
      %p198 = pneg %p192
      %p199 = scmp.eq.s32.totalorder %s23, 7
      %p200 = por %p198, %p199
      %p201 = scmp.ne.s32.totalorder %s193, %s196
      %p202 = scmp.eq.s32.totalorder %s23, 0
      %p203 = por %p201, %p202
      %p204 = scmp.ne.s32.totalorder %s193, %s196
      %p205 = scmp.eq.s32.totalorder %s28, 7
      %p206 = por %p204, %p205
      %p207 = scmp.ne.s32.totalorder %s196, %s197
      %p208 = scmp.eq.s32.totalorder %s28, 0
      %p209 = por %p207, %p208
      %p210 = scmp.ne.s32.totalorder %s196, %s197
      %p211 = scmp.eq.s32.totalorder %s29, 7
      %p212 = por %p210, %p211
      %p214 = scmp.ne.s32.totalorder %s197, %s213
      %p215 = scmp.eq.s32.totalorder %s29, 0
      %p216 = por %p214, %p215
      %p217 = scmp.le.s32.totalorder 1, %s23
      %p218 = scmp.lt.s32.totalorder %s23, 9
      %p219 = pnand %p217, %p218
      %p220 = pneg %p219
      // Predicated region
      $region9: #{tpu_custom_call.1} parent=5 // pred_check
        _
      $region10: #{tpu_custom_call.1} parent=5 // pred_check_branch
        %222 = sbr.rel (%p219) target = $region12
      $region11: #{tpu_custom_call.1} parent=5 // pred_region
        %s223 = ssub.s32 %s23, 1
        // Predicated region
        $region13: #{tpu_custom_call.1} parent=11 // pred_check
          %p224 = pneg %p82
        $region14: #{tpu_custom_call.1} parent=11 // pred_check_branch
          %226 = sbr.rel (%p224) target = $region16
        $region15: #{tpu_custom_call.1} parent=11 // pred_region
          %228 = vsyncadd [#allocation8], 0
          %s230 = sshll.u32 %s1, 4
          %s231 = int_to_ptr.hbm [resolvable:$true] %s230
          %s232 = sshll.u32 [#allocation7], 4
          %s233 = int_to_ptr.vmem [resolvable:$true] %s232
          %235 = dma.hbm_to_vmem [thread:$0]  %s231, 16, %s233, [#allocation8]
        $region16: #{tpu_custom_call.1} parent=11 // pred_fallthru
          _
        // Predicated region
        $region17: #{tpu_custom_call.1} parent=11 // pred_check
          %p236 = pneg %p103
        $region18: #{tpu_custom_call.1} parent=11 // pred_check_branch
          %238 = sbr.rel (%p236) target = $region20
        $region19: #{tpu_custom_call.1} parent=11 // pred_region
          _
        $region20: #{tpu_custom_call.1} parent=11 // pred_fallthru
          _
      $region12: #{tpu_custom_call.1} parent=5 // pred_fallthru
        _
      %p239 = scmp.lt.s32.totalorder %s23, 8
      // Predicated region
      $region21: #{tpu_custom_call.1} parent=5 // pred_check
        %p240 = pneg %p239
      $region22: #{tpu_custom_call.1} parent=5 // pred_check_branch
        %242 = sbr.rel (%p240) target = $region24
      $region23: #{tpu_custom_call.1} parent=5 // pred_region
        // Predicated region
        $region25: #{tpu_custom_call.1} parent=23 // pred_check
          %p243 = pneg %p55
        $region26: #{tpu_custom_call.1} parent=23 // pred_check_branch
          %245 = sbr.rel (%p243) target = $region28
        $region27: #{tpu_custom_call.1} parent=23 // pred_region
          %s246 = sand.u32 %s23, 1
          %s247 = scalar_lea.sflag [#allocation5], %s246
          %s248 = sand.u32 %s45, 1
          %s249 = smul.addr %s248, 8
          %s250 = scalar_lea.vmem [#allocation4], %s249
          %252 = vsyncadd %s247, 0
          %s253 = smul.addr %s30, 8
          %s254 = scalar_lea.hbm %s0, %s253
          %s256 = sshll.u32 %s254, 4
          %s257 = int_to_ptr.hbm [resolvable:$true] %s256
          %s258 = sshll.u32 %s250, 4
          %s259 = int_to_ptr.vmem [resolvable:$true] %s258
          %261 = dma.hbm_to_vmem [thread:$0]  %s257, 128, %s259, %s247
        $region28: #{tpu_custom_call.1} parent=23 // pred_fallthru
          _
        // Predicated region
        $region29: #{tpu_custom_call.1} parent=23 // pred_check
          %p262 = pneg %p123
        $region30: #{tpu_custom_call.1} parent=23 // pred_check_branch
          %264 = sbr.rel (%p262) target = $region32
        $region31: #{tpu_custom_call.1} parent=23 // pred_region
          #allocation15 [shape = 'u32[6]{0}', space=smem, size = 0x18, scoped, tag = 'DMA stride descriptor']
          %s265 = sand.u32 %s23, 1
          %s266 = scalar_lea.sflag [#allocation5], %s265
          %s267 = sand.u32 %s113, 1
          %s268 = smul.addr %s267, 24
          %s269 = scalar_lea.vmem [#allocation9], %s268
          %271 = vsyncadd %s266, 0
          %s272 = smul.addr %s31, 2
          %s273 = smul.addr %s272, 4
          %s274 = scalar_lea.hbm %s3, %s273
          %s276 = sshll.u32 1, 14
          %s277 = sxor.u32 4294967295, %s276
          %s279 = sld [smem:[#allocation0]]
          %s280 = sadd.s32 2, %s279
          %s282 = sshll.u32 7, 26
          %s283 = sxor.u32 4294967295, %s282
          %s284 = sand.u32 0, %s283
          %s285 = sshll.u32 %s280, 26
          %s286 = sor.u32 %s284, %s285
          %s287 = sshll.u32 %s274, 4
          %s288 = int_to_ptr.hbm [resolvable:$true] %s287
          %s289 = sshll.u32 %s269, 4
          %s290 = int_to_ptr.vmem [resolvable:$true] %s289
          %296 = sst [smem:[#allocation15]] 512
          %s297 = scalar_lea.smem [#allocation15], 1
          %298 = sst [smem:[%s297]] 128
          %s299 = scalar_lea.smem [#allocation15], 2
          %300 = sst [smem:[%s299]] 2
          %s301 = scalar_lea.smem [#allocation15], 3
          %302 = sst [smem:[%s301]] 64
          %s303 = scalar_lea.smem [#allocation15], 4
          %304 = sst [smem:[%s303]] 64
          %s305 = scalar_lea.smem [#allocation15], 5
          %306 = sst [smem:[%s305]] 4
          %308 = dma.general %s288, 384, %s290, %s266, [#allocation14], [#allocation15], %s286, 0
        $region32: #{tpu_custom_call.1} parent=23 // pred_fallthru
          _
        // Predicated region
        $region33: #{tpu_custom_call.1} parent=23 // pred_check
          %p309 = pneg %p149
        $region34: #{tpu_custom_call.1} parent=23 // pred_check_branch
          %311 = sbr.rel (%p309) target = $region36
        $region35: #{tpu_custom_call.1} parent=23 // pred_region
          %s312 = sand.u32 %s23, 1
          %s313 = scalar_lea.sflag [#allocation5], %s312
          %s314 = sand.u32 %s139, 1
          %s315 = smul.addr %s314, 8
          %s316 = scalar_lea.vmem [#allocation10], %s315
          %318 = vsyncadd %s313, 0
          %s319 = smul.addr %s31, 2
          %s320 = smul.addr %s319, 4
          %s321 = scalar_lea.hbm %s4, %s320
          %s322 = sshll.u32 %s321, 4
          %s323 = int_to_ptr.hbm [resolvable:$true] %s322
          %s324 = sshll.u32 %s316, 4
          %s325 = int_to_ptr.vmem [resolvable:$true] %s324
          %330 = dma.hbm_to_vmem [thread:$0]  %s323, 128, %s325, %s313, 64, 64, 4
        $region36: #{tpu_custom_call.1} parent=23 // pred_fallthru
          _
      $region24: #{tpu_custom_call.1} parent=5 // pred_fallthru
        _
      %p331 = scmp.le.s32.totalorder 1, %s23
      %p332 = scmp.lt.s32.totalorder %s23, 9
      %p333 = pnand %p331, %p332
      %p334 = pneg %p333
      // Predicated region
      $region37: #{tpu_custom_call.1} parent=5 // pred_check
        _
      $region38: #{tpu_custom_call.1} parent=5 // pred_check_branch
        %336 = sbr.rel (%p333) target = $region40
      $region39: #{tpu_custom_call.1} parent=5 // pred_region
        %s337 = ssub.s32 %s23, 1
        %s338 = sand.u32 %s28, 1
        %s339 = scalar_lea.sflag [#allocation5], %s338
        %s340 = sand.u32 %s48, 1
        %s341 = smul.addr %s340, 8
        %s342 = scalar_lea.vmem [#allocation4], %s341
        // Predicated region
        $region41: #{tpu_custom_call.1} parent=39 // pred_check
          %p343 = pneg %p61
        $region42: #{tpu_custom_call.1} parent=39 // pred_check_branch
          %345 = sbr.rel (%p343) target = $region44
        $region43: #{tpu_custom_call.1} parent=39 // pred_region
          %347 = dma.done %s339, 128
        $region44: #{tpu_custom_call.1} parent=39 // pred_fallthru
          _
        // Predicated region
        $region45: #{tpu_custom_call.1} parent=39 // pred_check
          %p348 = pneg %p82
        $region46: #{tpu_custom_call.1} parent=39 // pred_check_branch
          %350 = sbr.rel (%p348) target = $region48
        $region47: #{tpu_custom_call.1} parent=39 // pred_region
          %352 = dma.done [#allocation8], 16
        $region48: #{tpu_custom_call.1} parent=39 // pred_fallthru
          _
        %s353 = sand.u32 %s28, 1
        %s354 = scalar_lea.sflag [#allocation5], %s353
        %s355 = sand.u32 %s116, 1
        %s356 = smul.addr %s355, 24
        %s357 = scalar_lea.vmem [#allocation9], %s356
        // Predicated region
        $region49: #{tpu_custom_call.1} parent=39 // pred_check
          %p358 = pneg %p129
        $region50: #{tpu_custom_call.1} parent=39 // pred_check_branch
          %360 = sbr.rel (%p358) target = $region52
        $region51: #{tpu_custom_call.1} parent=39 // pred_region
          %362 = dma.done %s354, 384
        $region52: #{tpu_custom_call.1} parent=39 // pred_fallthru
          _
        %s363 = sand.u32 %s28, 1
        %s364 = scalar_lea.sflag [#allocation5], %s363
        %s365 = sand.u32 %s142, 1
        %s366 = smul.addr %s365, 8
        %s367 = scalar_lea.vmem [#allocation10], %s366
        // Predicated region
        $region53: #{tpu_custom_call.1} parent=39 // pred_check
          %p368 = pneg %p155
        $region54: #{tpu_custom_call.1} parent=39 // pred_check_branch
          %370 = sbr.rel (%p368) target = $region56
        $region55: #{tpu_custom_call.1} parent=39 // pred_region
          %372 = dma.done %s364, 128
        $region56: #{tpu_custom_call.1} parent=39 // pred_fallthru
          _
        %s373 = sand.u32 %s28, 1
        %s374 = scalar_lea.sflag [#allocation5], %s373
        %s375 = sand.u32 %s48, 1
        %s376 = smul.addr %s375, 8
        %s377 = scalar_lea.vmem [#allocation4], %s376
        %p378 = pneg %p61
        %p379 = pneg %p58
        %p380 = pneg %p82
        %p381 = pneg %p79
        %p382 = pneg %p103
        %p383 = pneg %p100
        %s384 = sand.u32 %s28, 1
        %s385 = scalar_lea.sflag [#allocation5], %s384
        %s386 = sand.u32 %s116, 1
        %s387 = smul.addr %s386, 24
        %s388 = scalar_lea.vmem [#allocation9], %s387
        %p389 = pneg %p129
        %p390 = pneg %p126
        %s391 = sand.u32 %s28, 1
        %s392 = scalar_lea.sflag [#allocation5], %s391
        %s393 = sand.u32 %s142, 1
        %s394 = smul.addr %s393, 8
        %s395 = scalar_lea.vmem [#allocation10], %s394
        %p396 = pneg %p155
        %p397 = pneg %p152
        %p398 = pneg %p181
        %p399 = pneg %p178
        %s400 = sand.u32 %s168, 1
        %s401 = scalar_lea.sflag [#allocation6], %s400
        %s402 = sand.u32 %s168, 1
        %s403 = smul.addr %s402, 8
        %s404 = scalar_lea.vmem [#allocation11], %s403
        %p405 = pneg %p209
        %p406 = pneg %p206
        %s407 = sand.u32 %s196, 1
        %s408 = scalar_lea.sflag [#allocation13], %s407
        %s409 = sand.u32 %s196, 1
        %s410 = smul.addr %s409, 8
        %s411 = scalar_lea.vmem [#allocation12], %s410
        %p413 = scmp.eq.s32.totalorder %s33, 0
        // Predicated region
        $region57: #{tpu_custom_call.1} parent=39 // pred_check
          %p414 = pneg %p413
        $region58: #{tpu_custom_call.1} parent=39 // pred_check_branch
          %416 = sbr.rel (%p414) target = $region60
        $region59: #{tpu_custom_call.1} parent=39 // pred_region
          %v417 = vld [vmem:[%s342] sm:$0xff]
          %vm418 = vcmask 261120
          %v419 = vsel %vm418, %v417, 0.0
          %420 = vadd.xlane.f32.xlu0 %v419
          %v421 = vpop.xlane.xlu0 %420
          %v422 = vrcp.pop 32.0
          %v423 = vmul.f32 32.0, %v422
          %v424 = vsub.f32 1.0, %v423
          %v425 = vmul.f32 %v422, %v424
          %v426 = vadd.f32 %v422, %v425
          %vm427 = vweird.f32 %v422
          %v428 = vsel %vm427, %v422, %v426
          %v429 = vmul.f32 %v421, %v428
          %v430 = vsub.f32 %v417, %v429
          %v431 = vmul.f32 %v430, %v430
          %v432 = vsel %vm418, %v431, 0.0
          %433 = vadd.xlane.f32.xlu0 %v432
          %v434 = vpop.xlane.xlu0 %433
          %v435 = vmul.f32 %v434, %v428
          %v436 = vadd.f32 %v435, 1e-05
          %v437 = vrsqrt.pop %v436
          %v438 = vmul.f32 %v437, %v436
          %v439 = vmul.f32 %v438, %v437
          %v440 = vmul.f32 0.5, %v439
          %v441 = vsub.f32 1.5, %v440
          %v442 = vmul.f32 %v437, %v441
          %vm443 = vweird.f32 %v436
          %vm444 = vweird.f32 %v437
          %vm445 = vmor %vm443, %vm444
          %v446 = vsel %vm445, %v437, %v442
          %v447 = vmul.f32 %v430, %v446
          %v448 = vld [vmem:[#allocation7] sm:$0x1]
          %v450 = vperm.slane %v448, 0
          %v452 = vmul.f32 %v447, %v450
          %v453 = vld [vmem:[%s2] sm:$0x1]
          %v455 = vperm.slane %v453, 0
          %v457 = vadd.f32 %v452, %v455
          %v458 = vpack.c.bf16 %v457, %v457
          %vm459 = vcmask 257024
          %460 = vst.msk [vmem:[#allocation2] sm:$0xf] %vm459, %v458
          %461 = vst.msk [vmem:[#allocation3] sm:$0xff] %vm418, 0.0
        $region60: #{tpu_custom_call.1} parent=39 // pred_fallthru
          _
        %v462 = vld [vmem:[#allocation2] sm:$0xf]
        %v463 = vld [vmem:[%s357] sm:$0xf]
        %v464 = vld [vmem:[%s357 + $0x4] sm:$0xf]
        %v465 = vld [vmem:[%s357 + $0x8] sm:$0xf]
        %v466 = vld [vmem:[%s357 + $0xc] sm:$0xf]
        %v467 = vld [vmem:[%s357 + $0x10] sm:$0xf]
        %v468 = vld [vmem:[%s357 + $0x14] sm:$0xf]
        %v469 = vld [vmem:[%s367] sm:$0xf]
        %v470 = vld [vmem:[%s367 + $0x4] sm:$0xf]
        %v473 = vunpack.c.l.b16 %v463
        %v474 = vunpack.c.l.b16 %v464
        %v475 = vpack.c.b16 %v474, %v473
        %vm476 = vcmask 261120
        %v478 = vsel %vm476, %v462, 0
        %v481 = vsel %vm476, %v475, 0
        %483 = vmatpush.bf16.xpose.msra.mxu0 0
        %484 = vmatpush.bf16.xpose.msra.mxu0 0
        %485 = vmatpush.bf16.xpose.msra.mxu0 0
        %486 = vmatpush.bf16.xpose.msra.mxu0 0
        %487 = vmatpush.bf16.xpose.msra.mxu0 0
        %488 = vmatpush.bf16.xpose.msra.mxu0 0
        %489 = vmatpush.bf16.xpose.msra.mxu0 0
        %490 = vmatpush.bf16.xpose.msra.mxu0 %v481
        %491 = vmatmul.bf16.gmra.mxu0 %v478
        %v492 = vpop.f32.mrf.mxu0
        %v493 = vadd.f32 0.0, %v492
        %v494 = vpop.f32.mrf.mxu0
        %495 = vdwg.mxu0
        %v498 = vunpack.c.l.b16 %v465
        %v499 = vunpack.c.l.b16 %v466
        %v500 = vpack.c.b16 %v499, %v498
        %v502 = vsel %vm476, %v500, 0
        %504 = vmatpush.bf16.xpose.msra.mxu0 0
        %505 = vmatpush.bf16.xpose.msra.mxu0 0
        %506 = vmatpush.bf16.xpose.msra.mxu0 0
        %507 = vmatpush.bf16.xpose.msra.mxu0 0
        %508 = vmatpush.bf16.xpose.msra.mxu0 0
        %509 = vmatpush.bf16.xpose.msra.mxu0 0
        %510 = vmatpush.bf16.xpose.msra.mxu0 0
        %511 = vmatpush.bf16.xpose.msra.mxu0 %v502
        %512 = vmatmul.bf16.gmra.mxu0 %v478
        %v513 = vpop.f32.mrf.mxu0
        %v514 = vadd.f32 0.0, %v513
        %v515 = vpop.f32.mrf.mxu0
        %516 = vdwg.mxu0
        %v519 = vunpack.c.l.b16 %v467
        %v520 = vunpack.c.l.b16 %v468
        %v521 = vpack.c.b16 %v520, %v519
        %v523 = vsel %vm476, %v521, 0
        %525 = vmatpush.bf16.xpose.msra.mxu0 0
        %526 = vmatpush.bf16.xpose.msra.mxu0 0
        %527 = vmatpush.bf16.xpose.msra.mxu0 0
        %528 = vmatpush.bf16.xpose.msra.mxu0 0
        %529 = vmatpush.bf16.xpose.msra.mxu0 0
        %530 = vmatpush.bf16.xpose.msra.mxu0 0
        %531 = vmatpush.bf16.xpose.msra.mxu0 0
        %532 = vmatpush.bf16.xpose.msra.mxu0 %v523
        %533 = vmatmul.bf16.gmra.mxu0 %v478
        %v534 = vpop.f32.mrf.mxu0
        %v535 = vadd.f32 0.0, %v534
        %v536 = vpop.f32.mrf.mxu0
        %537 = vdwg.mxu0
        %v538 = vpack.c.bf16 %v493, %v493
        %v539 = vpack.c.bf16 %v514, %v514
        %vm540 = vcmask 130048
        %v542 = vsel %vm540, %v538, 0
        %v545 = vsel %vm540, %v539, 0
        %547 = vmatpush.bf16.xpose.msra.mxu0 0
        %548 = vmatpush.bf16.xpose.msra.mxu0 0
        %549 = vmatpush.bf16.xpose.msra.mxu0 0
        %550 = vmatpush.bf16.xpose.msra.mxu0 0
        %551 = vmatpush.bf16.xpose.msra.mxu0 0
        %552 = vmatpush.bf16.xpose.msra.mxu0 0
        %553 = vmatpush.bf16.xpose.msra.mxu0 0
        %554 = vmatpush.bf16.xpose.msra.mxu0 %v545
        %555 = vmatmul.bf16.gmra.mxu0 %v542
        %v556 = vpop.f32.mrf.mxu0
        %v557 = vadd.f32 0.0, %v556
        %v558 = vpop.f32.mrf.mxu0
        %559 = vdwg.mxu0
        %vm560 = vcmask 64512
        %v561 = vsel %vm560, %v557, -inf
        %562 = vmax.xlane.f32.xlu0 %v561
        %v563 = vpop.xlane.xlu0 %562
        %v564 = vsub.f32 %v557, %v563
        %v565 = vmul.f32 %v564, 1.442695
        %v566 = vpow.pop %v565
        %v567 = vsel %vm560, %v566, 0.0
        %568 = vadd.xlane.f32.xlu0 %v567
        %v569 = vpop.xlane.xlu0 %568
        %v570 = vrcp.pop %v569
        %v571 = vmul.f32 %v566, %v570
        %572 = vst.msk [vmem:[%s411] sm:$0xff] %vm560, %v571
        %v573 = vpack.c.bf16 %v571, %v571
        %v574 = vpack.c.bf16 %v535, %v535
        %v576 = vsel %vm560, %v573, 0
        %vm578 = vcmask 1043456
        %v580 = vsel %vm578, %v574, 0
        %582 = vmatpush.bf16.msra.mxu0 0
        %583 = vmatpush.bf16.msra.mxu0 0
        %584 = vmatpush.bf16.msra.mxu0 0
        %585 = vmatpush.bf16.msra.mxu0 0
        %586 = vmatpush.bf16.msra.mxu0 0
        %587 = vmatpush.bf16.msra.mxu0 0
        %588 = vmatpush.bf16.msra.mxu0 0
        %589 = vmatpush.bf16.msra.mxu0 %v580
        %590 = vmatmul.bf16.gmra.mxu0 %v576
        %v591 = vpop.f32.mrf.mxu0
        %v592 = vadd.f32 0.0, %v591
        %v593 = vpop.f32.mrf.mxu0
        %594 = vdwg.mxu0
        %v595 = vld [vmem:[#allocation3] sm:$0xff]
        %v596 = vpack.c.bf16 %v592, %v592
        %v599 = vunpack.c.l.b16 %v469
        %v600 = vunpack.c.l.b16 %v470
        %v601 = vpack.c.b16 %v600, %v599
        %v604 = vsel %vm540, %v596, 0
        %606 = vmatpush.bf16.msra.mxu0 0
        %607 = vmatpush.bf16.msra.mxu0 0
        %608 = vmatpush.bf16.msra.mxu0 0
        %609 = vmatpush.bf16.msra.mxu0 0
        %610 = vmatpush.bf16.msra.mxu0 0
        %611 = vmatpush.bf16.msra.mxu0 0
        %612 = vmatpush.bf16.msra.mxu0 0
        %613 = vmatpush.bf16.msra.mxu0 %v601
        %614 = vmatmul.bf16.gmra.mxu0 %v604
        %v615 = vpop.f32.mrf.mxu0
        %v616 = vadd.f32 0.0, %v615
        %v617 = vpop.f32.mrf.mxu0
        %618 = vdwg.mxu0
        %v619 = vadd.f32 %v595, %v616
        %620 = vst.msk [vmem:[#allocation3] sm:$0xff] %vm476, %v619
        %p621 = scmp.eq.s32.totalorder %s33, 3
        // Predicated region
        $region61: #{tpu_custom_call.1} parent=39 // pred_check
          %p622 = pneg %p621
        $region62: #{tpu_custom_call.1} parent=39 // pred_check_branch
          %624 = sbr.rel (%p622) target = $region64
        $region63: #{tpu_custom_call.1} parent=39 // pred_region
          %v625 = vld [vmem:[#allocation3] sm:$0xff]
          %626 = vst.msk [vmem:[%s404] sm:$0xff] %vm476, %v625
        $region64: #{tpu_custom_call.1} parent=39 // pred_fallthru
          _
        %s627 = sand.u32 %s168, 1
        %s628 = scalar_lea.sflag [#allocation6], %s627
        %s629 = sand.u32 %s168, 1
        %s630 = smul.addr %s629, 8
        %s631 = scalar_lea.vmem [#allocation11], %s630
        %s632 = sand.u32 %s196, 1
        %s633 = scalar_lea.sflag [#allocation13], %s632
        %s634 = sand.u32 %s196, 1
        %s635 = smul.addr %s634, 8
        %s636 = scalar_lea.vmem [#allocation12], %s635
        // Predicated region
        $region65: #{tpu_custom_call.1} parent=39 // pred_check
          %p637 = pneg %p178
        $region66: #{tpu_custom_call.1} parent=39 // pred_check_branch
          %639 = sbr.rel (%p637) target = $region68
        $region67: #{tpu_custom_call.1} parent=39 // pred_region
          %641 = vsyncadd %s628, 0
          %s642 = smul.addr %s32, 8
          %s643 = scalar_lea.hbm %s5, %s642
          %s645 = sshll.u32 %s631, 4
          %s646 = int_to_ptr.vmem [resolvable:$true] %s645
          %s647 = sshll.u32 %s643, 4
          %s648 = int_to_ptr.hbm [resolvable:$true] %s647
          %650 = dma.vmem_to_hbm [thread:$0]  %s646, 128, %s648, %s628
        $region68: #{tpu_custom_call.1} parent=39 // pred_fallthru
          _
        // Predicated region
        $region69: #{tpu_custom_call.1} parent=39 // pred_check
          %p651 = pneg %p206
        $region70: #{tpu_custom_call.1} parent=39 // pred_check_branch
          %653 = sbr.rel (%p651) target = $region72
        $region71: #{tpu_custom_call.1} parent=39 // pred_region
          %655 = vsyncadd %s633, 0
          %s656 = smul.addr %s32, 4
          %s657 = sadd.s32 %s33, %s656
          %s658 = smul.addr %s657, 8
          %s659 = scalar_lea.hbm %s6, %s658
          %s661 = sshll.u32 %s636, 4
          %s662 = int_to_ptr.vmem [resolvable:$true] %s661
          %s663 = sshll.u32 %s659, 4
          %s664 = int_to_ptr.hbm [resolvable:$true] %s663
          %666 = dma.vmem_to_hbm [thread:$0]  %s662, 128, %s664, %s633
        $region72: #{tpu_custom_call.1} parent=39 // pred_fallthru
          _
      $region40: #{tpu_custom_call.1} parent=5 // pred_fallthru
        _
      %p667 = scmp.le.s32.totalorder 2, %s23
      // Predicated region
      $region73: #{tpu_custom_call.1} parent=5 // pred_check
        %p668 = pneg %p667
      $region74: #{tpu_custom_call.1} parent=5 // pred_check_branch
        %670 = sbr.rel (%p668) target = $region76
      $region75: #{tpu_custom_call.1} parent=5 // pred_region
        %s671 = ssub.s32 %s23, 2
        // Predicated region
        $region77: #{tpu_custom_call.1} parent=75 // pred_check
          %p672 = pneg %p184
        $region78: #{tpu_custom_call.1} parent=75 // pred_check_branch
          %674 = sbr.rel (%p672) target = $region80
        $region79: #{tpu_custom_call.1} parent=75 // pred_region
          %s675 = sand.u32 %s169, 1
          %s676 = scalar_lea.sflag [#allocation6], %s675
          %s677 = sand.u32 %s169, 1
          %s678 = smul.addr %s677, 8
          %s679 = scalar_lea.vmem [#allocation11], %s678
          %681 = dma.done %s676, 128
        $region80: #{tpu_custom_call.1} parent=75 // pred_fallthru
          _
        // Predicated region
        $region81: #{tpu_custom_call.1} parent=75 // pred_check
          %p682 = pneg %p212
        $region82: #{tpu_custom_call.1} parent=75 // pred_check_branch
          %684 = sbr.rel (%p682) target = $region84
        $region83: #{tpu_custom_call.1} parent=75 // pred_region
          %s685 = sand.u32 %s197, 1
          %s686 = scalar_lea.sflag [#allocation13], %s685
          %s687 = sand.u32 %s197, 1
          %s688 = smul.addr %s687, 8
          %s689 = scalar_lea.vmem [#allocation12], %s688
          %691 = dma.done %s686, 128
        $region84: #{tpu_custom_call.1} parent=75 // pred_fallthru
          _
      $region76: #{tpu_custom_call.1} parent=5 // pred_fallthru
        _
    $region6: #{tpu_custom_call.1} parent=1 // loop_footer
      %s27 = sadd.s32 1, %s23
    $region7: #{tpu_custom_call.1} parent=1 // loop_footer_branch
      %22 = sbr.rel target = $region3
    $region8: #{tpu_custom_call.1} parent=1 // loop_exit
      _
    %692 = vsyncpa [#allocation5], 1
    %s693 = scalar_lea.sflag [#allocation5], 1
    %694 = vsyncpa %s693, 1
    %695 = vsyncpa [#allocation8], 1
    %696 = vsyncpa [#allocation6], 1
    %s697 = scalar_lea.sflag [#allocation6], 1
    %698 = vsyncpa %s697, 1
    %699 = vsyncpa [#allocation13], 1
    %s700 = scalar_lea.sflag [#allocation13], 1
    %701 = vsyncpa %s700, 1

</llo_original>
